<compile_context>
chip_gen: v7x
topology: tpu7x:2x2x1
jax: 0.10.0
libtpu: 0.0.40
codegen_flags: <defaults>
</compile_context>

<pallas_src>
import functools

import jax
import jax.numpy as jnp
from jax import lax
from jax.experimental import pallas as pl
from jax.experimental.pallas import tpu as pltpu


def _round_up(x, m):
    return (x + m - 1) // m * m


def _topkid_trinet_kernel(seq_len, emb_dim,
                          xr_ref,     # [S, TB, Cin]  bf16, time-major GRU input
                          wih_ref,    # [Cin, 3E]     bf16, gate-fused (r|z|n)
                          whh_ref,    # [E, 3E]       bf16, gate-fused (r|z|n)
                          bg_ref,     # [1, 3E]       f32, folded bias (r:b_ih+b_hh, z:b_ih+b_hh, n:b_ih)
                          bhn_ref,    # [1, E]        f32, b_hh for n gate (inside r*(...))
                          wfc_ref,    # [E, Fpad]     bf16, lane-dense fc head
                          bfc_ref,    # [1, Fpad]     f32
                          out_ref,    # [TB, Fpad]    f32
                          gi_ref):    # VMEM scratch [S, TB, 3E] f32
    E = emb_dim
    S = seq_len

    xr = xr_ref[...]                                   # [S, TB, Cin] bf16
    TB = xr.shape[1]
    Cin = xr.shape[2]
    x2d = xr.reshape(S * TB, Cin)                      # leading-dim collapse (free)

    # ---- hoisted, gate-fused input projection: ONE wide matmul + ONE bias ----
    gi_ref[...] = (jnp.dot(x2d, wih_ref[...], preferred_element_type=jnp.float32)
                   + bg_ref[...]).reshape(S, TB, 3 * E)

    whh = whh_ref[...]                                 # [E, 3E] bf16, loop-invariant
    b_hn = jnp.broadcast_to(bhn_ref[...], (TB, E))     # hoisted broadcast

    # ---- GRU recurrence: ONE h @ w_hh_cat matmul per step on the serial path -
    def step(t, h):
        gi = gi_ref[t]                                 # [TB, 3E] f32 (ref read -> bounded live range)
        gh = jnp.dot(h.astype(jnp.bfloat16), whh,
                     preferred_element_type=jnp.float32)          # [TB, 3E]
        rz = jax.nn.sigmoid(gi[:, :2 * E] + gh[:, :2 * E])        # r||z in one op
        r = rz[:, :E]
        z = rz[:, E:]
        n = jnp.tanh(gi[:, 2 * E:] + r * (gh[:, 2 * E:] + b_hn))
        return (1.0 - z) * n + z * h

    h = lax.fori_loop(0, S, step, jnp.zeros((TB, E), jnp.float32), unroll=True)

    # ---- Linear head into lane-dense (128-padded) feature dim ----------------
    y = (jnp.dot(h.astype(jnp.bfloat16), wfc_ref[...],
                 preferred_element_type=jnp.float32) + bfc_ref[...])

    # ---- F.normalize(p=2, dim=1): y / max(||y||_2, eps) == y*rsqrt(max(ss,eps^2))
    sumsq = jnp.sum(y * y, axis=1, keepdims=True)
    out_ref[...] = y * lax.rsqrt(jnp.maximum(sumsq, 1e-24))


def init_params(key, c, s, emb_dim, feature_dim):
    """Deterministic synthetic parameters for the injected `embdistance` module.

    Weights are laid out once, here, in the kernel-friendly format:
      * gate-fused GRU weights [., 3E] (lane order r | z | n), bf16
      * b_ih + b_hh pre-folded for the r/z gates, b_ih only for n (loop-invariant)
      * fc head zero-padded to a lane-dense (multiple-of-128) output width
    """
    ks = jax.random.split(key, 6)
    cin = c * 10                       # per-timestep GRU input: C layers x 10 distances
    E = emb_dim
    f_pad = _round_up(feature_dim, 128)
    scale = 0.05
    w_ih = scale * jax.random.normal(ks[0], (3, cin, E), jnp.float32)   # (r, z, n)
    w_hh = scale * jax.random.normal(ks[1], (3, E, E), jnp.float32)
    b_ih = scale * jax.random.normal(ks[2], (3, E), jnp.float32)
    b_hh = scale * jax.random.normal(ks[3], (3, E), jnp.float32)
    w_fc = scale * jax.random.normal(ks[4], (E, feature_dim), jnp.float32)
    b_fc = scale * jax.random.normal(ks[5], (1, feature_dim), jnp.float32)

    # gate-fused layouts (lane order r | z | n)
    w_ih_cat = jnp.concatenate([w_ih[0], w_ih[1], w_ih[2]], axis=1)     # [cin, 3E]
    w_hh_cat = jnp.concatenate([w_hh[0], w_hh[1], w_hh[2]], axis=1)     # [E, 3E]
    # folded input-projection bias: b_ih+b_hh for r/z, b_ih only for n
    b_g = jnp.concatenate([b_ih[0] + b_hh[0],
                           b_ih[1] + b_hh[1],
                           b_ih[2]])[None, :]                           # [1, 3E]
    b_hn = b_hh[2][None, :]                                             # [1, E]

    return dict(
        w_ih=w_ih_cat.astype(jnp.bfloat16),
        w_hh=w_hh_cat.astype(jnp.bfloat16),
        b_g=b_g,
        b_hn=b_hn,
        w_fc=jnp.pad(w_fc, ((0, 0), (0, f_pad - feature_dim))).astype(jnp.bfloat16),
        b_fc=jnp.pad(b_fc, ((0, 0), (0, f_pad - feature_dim))),
    )


@functools.partial(jax.jit, static_argnames=("act_dim", "emb_dim", "feature_dim"))
def topkid_trinet(x, params, *, act_dim, emb_dim, feature_dim):
    """x: [B, C, S, D] with D >= act_dim + 11. Returns L2-normalized [B, feature_dim]."""
    B, C, S, D = x.shape
    assert D >= act_dim + 11

    cin = C * 10
    E = emb_dim
    f_pad = _round_up(feature_dim, 128)

    # TopkIdTriNet slice: top-k embedding distances -> [B, C, S, 10].
    # bf16 cast is fused into the slice so the time-major relayout pass that
    # materializes xr writes/reads half the bytes.
    x_embdis = x[:, :, :, act_dim + 1: act_dim + 11].astype(jnp.bfloat16)

    # Time-major so per-step reads in the kernel are leading-axis views: [S, B, C*10]
    xr = jnp.transpose(x_embdis, (2, 0, 1, 3)).reshape(S, B, cin)

    # Batch tiling: multiple-of-8 row tile, cap 256; for B > 8 force >= 2 grid
    # steps so dimension_semantics=("parallel",) can shard across both v7x TCs.
    if B > 8:
        tb = min(256, _round_up(pl.cdiv(B, 2), 8))
    else:
        tb = _round_up(B, 8)
    b_pad = _round_up(B, tb)
    if b_pad != B:
        xr = jnp.pad(xr, ((0, 0), (0, b_pad - B), (0, 0)))

    grid = (b_pad // tb,)
    kernel = functools.partial(_topkid_trinet_kernel, S, E)

    out = pl.pallas_call(
        kernel,
        out_shape=jax.ShapeDtypeStruct((b_pad, f_pad), jnp.float32),
        grid=grid,
        in_specs=[
            pl.BlockSpec((S, tb, cin), lambda i: (0, i, 0)),      # xr (batch-tiled)
            pl.BlockSpec((cin, 3 * E), lambda i: (0, 0)),         # w_ih (fused)
            pl.BlockSpec((E, 3 * E), lambda i: (0, 0)),           # w_hh (fused)
            pl.BlockSpec((1, 3 * E), lambda i: (0, 0)),           # b_g (folded)
            pl.BlockSpec((1, E), lambda i: (0, 0)),               # b_hn
            pl.BlockSpec((E, f_pad), lambda i: (0, 0)),           # w_fc
            pl.BlockSpec((1, f_pad), lambda i: (0, 0)),           # b_fc
        ],
        out_specs=pl.BlockSpec((tb, f_pad), lambda i: (i, 0)),
        scratch_shapes=[pltpu.VMEM((S, tb, 3 * E), jnp.float32)], # staged gi
        compiler_params=pltpu.CompilerParams(
            dimension_semantics=("parallel",)),                    # megacore on v7x
    )(xr, params["w_ih"], params["w_hh"], params["b_g"],
      params["b_hn"], params["w_fc"], params["b_fc"])

    # Slice off batch padding and the lane padding of the fc head.
    return out[:B, :feature_dim]


if __name__ == "__main__":
    # Small shapes consistent with the module's forward pass.
    B, C, S = 2, 4, 8
    ACT_DIM = 16
    D = ACT_DIM + 11 + 5      # activation slice + rank + 10 distance cols + extra
    EMB_DIM = 32
    FEATURE_DIM = 64

    key = jax.random.PRNGKey(0)
    k_x, k_p = jax.random.split(key)
    x = jax.random.normal(k_x, (B, C, S, D), jnp.float32)
    params = init_params(k_p, C, S, EMB_DIM, FEATURE_DIM)

    emb = topkid_trinet(x, params, act_dim=ACT_DIM,
                        emb_dim=EMB_DIM, feature_dim=FEATURE_DIM)
    emb = jax.block_until_ready(emb)

    assert emb.shape == (B, FEATURE_DIM)
    assert bool(jnp.all(jnp.isfinite(emb)))
    # rows should be (near) unit-norm
    norms = jnp.sqrt(jnp.sum(emb * emb, axis=1))
    assert bool(jnp.all(jnp.abs(norms - 1.0) < 1e-3))
    print("KERNEL_OK")
</pallas_src>

<mosaic_0001>
module attributes {stable_mosaic.version = 11 : i64} {
  func.func @_topkid_trinet_kernel(%arg0: i32, %arg1: memref<8x8x40xbf16, #tpu.memory_space<vmem>>, %arg2: memref<40x96xbf16, #tpu.memory_space<vmem>>, %arg3: memref<32x96xbf16, #tpu.memory_space<vmem>>, %arg4: memref<1x96xf32, #tpu.memory_space<vmem>>, %arg5: memref<1x32xf32, #tpu.memory_space<vmem>>, %arg6: memref<32x128xbf16, #tpu.memory_space<vmem>>, %arg7: memref<1x128xf32, #tpu.memory_space<vmem>>, %arg8: memref<8x128xf32, #tpu.memory_space<vmem>>, %arg9: memref<8x8x96xf32, #tpu.memory_space<vmem>>) attributes {dimension_semantics = [#tpu.dimension_semantics<parallel>], iteration_bounds = array<i64: 1>, scalar_prefetch = 0 : i64, scratch_operands = 1 : i64, tpu.core_type = #tpu.core_type<tc>, window_params = [{transform_indices = @transform_0, window_bounds = array<i64: 8, 8, 40>}, {pipeline_mode = #tpu.pipeline_mode<synchronous>, transform_indices = @transform_1, window_bounds = array<i64: 40, 96>}, {pipeline_mode = #tpu.pipeline_mode<synchronous>, transform_indices = @transform_2, window_bounds = array<i64: 32, 96>}, {pipeline_mode = #tpu.pipeline_mode<synchronous>, transform_indices = @transform_3, window_bounds = array<i64: 1, 96>}, {pipeline_mode = #tpu.pipeline_mode<synchronous>, transform_indices = @transform_4, window_bounds = array<i64: 1, 32>}, {pipeline_mode = #tpu.pipeline_mode<synchronous>, transform_indices = @transform_5, window_bounds = array<i64: 32, 128>}, {pipeline_mode = #tpu.pipeline_mode<synchronous>, transform_indices = @transform_6, window_bounds = array<i64: 1, 128>}, {transform_indices = @transform_7, window_bounds = array<i64: 8, 128>}]} {
    %c0 = arith.constant 0 : index
    %c0_0 = arith.constant 0 : index
    %c0_1 = arith.constant 0 : index
    %0 = vector.load %arg1[%c0, %c0_0, %c0_1] : memref<8x8x40xbf16, #tpu.memory_space<vmem>>, vector<8x8x40xbf16>
    %1 = vector.shape_cast %0 : vector<8x8x40xbf16> to vector<64x40xbf16>
    %c0_2 = arith.constant 0 : index
    %c0_3 = arith.constant 0 : index
    %2 = vector.load %arg2[%c0_2, %c0_3] : memref<40x96xbf16, #tpu.memory_space<vmem>>, vector<40x96xbf16>
    %cst = arith.constant dense<0.000000e+00> : vector<64x96xf32>
    %3 = tpu.matmul %1, %2, %cst {dimension_numbers = #tpu.dot_dimension_numbers<[1], [0], [0], [1], [0, 0, 1, 1], [], []>} : vector<64x40xbf16>, vector<40x96xbf16>, vector<64x96xf32> -> vector<64x96xf32>
    %c0_4 = arith.constant 0 : index
    %c0_5 = arith.constant 0 : index
    %4 = vector.load %arg4[%c0_4, %c0_5] : memref<1x96xf32, #tpu.memory_space<vmem>>, vector<1x96xf32>
    %5 = vector.broadcast %4 : vector<1x96xf32> to vector<64x96xf32>
    %6 = arith.addf %3, %5 : vector<64x96xf32>
    %7 = vector.shape_cast %6 : vector<64x96xf32> to vector<8x8x96xf32>
    %c0_6 = arith.constant 0 : index
    %c0_7 = arith.constant 0 : index
    %c0_8 = arith.constant 0 : index
    %8 = vector.load %arg9[%c0_6, %c0_7, %c0_8] : memref<8x8x96xf32, #tpu.memory_space<vmem>>, vector<8x8x96xf32>
    tpu.vector_store %arg9[%c0_6, %c0_7, %c0_8], %7 {strides = array<i32>} : memref<8x8x96xf32, #tpu.memory_space<vmem>>, vector<8x8x96xf32>,
    %c0_9 = arith.constant 0 : index
    %c0_10 = arith.constant 0 : index
    %9 = vector.load %arg3[%c0_9, %c0_10] : memref<32x96xbf16, #tpu.memory_space<vmem>>, vector<32x96xbf16>
    %c0_11 = arith.constant 0 : index
    %c0_12 = arith.constant 0 : index
    %10 = vector.load %arg5[%c0_11, %c0_12] : memref<1x32xf32, #tpu.memory_space<vmem>>, vector<1x32xf32>
    %11 = vector.shape_cast %10 : vector<1x32xf32> to vector<1x32xf32>
    %12 = vector.broadcast %11 : vector<1x32xf32> to vector<8x32xf32>
    %cst_13 = arith.constant 0.000000e+00 : f32
    %13 = vector.broadcast %cst_13 : f32 to vector<8x32xf32>
    %c0_i32 = arith.constant 0 : i32
    %14 = arith.index_cast %c0_i32 : i32 to index
    %c0_14 = arith.constant 0 : index
    %c0_15 = arith.constant 0 : index
    %15 = vector.load %arg9[%14, %c0_14, %c0_15] : memref<8x8x96xf32, #tpu.memory_space<vmem>>, vector<1x8x96xf32>
    %16 = vector.shape_cast %15 : vector<1x8x96xf32> to vector<8x96xf32>
    %17 = arith.truncf %13 : vector<8x32xf32> to vector<8x32xbf16>
    %cst_16 = arith.constant dense<0.000000e+00> : vector<8x96xf32>
    %18 = tpu.matmul %17, %9, %cst_16 {dimension_numbers = #tpu.dot_dimension_numbers<[1], [0], [0], [1], [0, 0, 1, 1], [], []>} : vector<8x32xbf16>, vector<32x96xbf16>, vector<8x96xf32> -> vector<8x96xf32>
    %19 = vector.extract_strided_slice %16 {offsets = [0, 0], sizes = [8, 64], strides = [1, 1]} : vector<8x96xf32> to vector<8x64xf32>
    %20 = vector.extract_strided_slice %18 {offsets = [0, 0], sizes = [8, 64], strides = [1, 1]} : vector<8x96xf32> to vector<8x64xf32>
    %21 = arith.addf %19, %20 : vector<8x64xf32>
    %22 = arith.negf %21 : vector<8x64xf32>
    %23 = math.exp %22 : vector<8x64xf32>
    %cst_17 = arith.constant 1.000000e+00 : f32
    %24 = vector.broadcast %cst_17 : f32 to vector<8x64xf32>
    %25 = arith.addf %24, %23 : vector<8x64xf32>
    %26 = arith.divf %24, %25 : vector<8x64xf32>
    %27 = vector.extract_strided_slice %26 {offsets = [0, 0], sizes = [8, 32], strides = [1, 1]} : vector<8x64xf32> to vector<8x32xf32>
    %28 = vector.extract_strided_slice %26 {offsets = [0, 32], sizes = [8, 32], strides = [1, 1]} : vector<8x64xf32> to vector<8x32xf32>
    %29 = vector.extract_strided_slice %16 {offsets = [0, 64], sizes = [8, 32], strides = [1, 1]} : vector<8x96xf32> to vector<8x32xf32>
    %30 = vector.extract_strided_slice %18 {offsets = [0, 64], sizes = [8, 32], strides = [1, 1]} : vector<8x96xf32> to vector<8x32xf32>
    %31 = arith.addf %30, %12 : vector<8x32xf32>
    %32 = arith.mulf %27, %31 : vector<8x32xf32>
    %33 = arith.addf %29, %32 : vector<8x32xf32>
    %34 = math.tanh %33 : vector<8x32xf32>
    %cst_18 = arith.constant 1.000000e+00 : f32
    %35 = vector.broadcast %cst_18 : f32 to vector<8x32xf32>
    %36 = arith.subf %35, %28 : vector<8x32xf32>
    %37 = arith.mulf %36, %34 : vector<8x32xf32>
    %38 = arith.mulf %28, %13 : vector<8x32xf32>
    %39 = arith.addf %37, %38 : vector<8x32xf32>
    %c1_i32 = arith.constant 1 : i32
    %40 = arith.index_cast %c1_i32 : i32 to index
    %c0_19 = arith.constant 0 : index
    %c0_20 = arith.constant 0 : index
    %41 = vector.load %arg9[%40, %c0_19, %c0_20] : memref<8x8x96xf32, #tpu.memory_space<vmem>>, vector<1x8x96xf32>
    %42 = vector.shape_cast %41 : vector<1x8x96xf32> to vector<8x96xf32>
    %43 = arith.truncf %39 : vector<8x32xf32> to vector<8x32xbf16>
    %cst_21 = arith.constant dense<0.000000e+00> : vector<8x96xf32>
    %44 = tpu.matmul %43, %9, %cst_21 {dimension_numbers = #tpu.dot_dimension_numbers<[1], [0], [0], [1], [0, 0, 1, 1], [], []>} : vector<8x32xbf16>, vector<32x96xbf16>, vector<8x96xf32> -> vector<8x96xf32>
    %45 = vector.extract_strided_slice %42 {offsets = [0, 0], sizes = [8, 64], strides = [1, 1]} : vector<8x96xf32> to vector<8x64xf32>
    %46 = vector.extract_strided_slice %44 {offsets = [0, 0], sizes = [8, 64], strides = [1, 1]} : vector<8x96xf32> to vector<8x64xf32>
    %47 = arith.addf %45, %46 : vector<8x64xf32>
    %48 = arith.negf %47 : vector<8x64xf32>
    %49 = math.exp %48 : vector<8x64xf32>
    %cst_22 = arith.constant 1.000000e+00 : f32
    %50 = vector.broadcast %cst_22 : f32 to vector<8x64xf32>
    %51 = arith.addf %50, %49 : vector<8x64xf32>
    %52 = arith.divf %50, %51 : vector<8x64xf32>
    %53 = vector.extract_strided_slice %52 {offsets = [0, 0], sizes = [8, 32], strides = [1, 1]} : vector<8x64xf32> to vector<8x32xf32>
    %54 = vector.extract_strided_slice %52 {offsets = [0, 32], sizes = [8, 32], strides = [1, 1]} : vector<8x64xf32> to vector<8x32xf32>
    %55 = vector.extract_strided_slice %42 {offsets = [0, 64], sizes = [8, 32], strides = [1, 1]} : vector<8x96xf32> to vector<8x32xf32>
    %56 = vector.extract_strided_slice %44 {offsets = [0, 64], sizes = [8, 32], strides = [1, 1]} : vector<8x96xf32> to vector<8x32xf32>
    %57 = arith.addf %56, %12 : vector<8x32xf32>
    %58 = arith.mulf %53, %57 : vector<8x32xf32>
    %59 = arith.addf %55, %58 : vector<8x32xf32>
    %60 = math.tanh %59 : vector<8x32xf32>
    %cst_23 = arith.constant 1.000000e+00 : f32
    %61 = vector.broadcast %cst_23 : f32 to vector<8x32xf32>
    %62 = arith.subf %61, %54 : vector<8x32xf32>
    %63 = arith.mulf %62, %60 : vector<8x32xf32>
    %64 = arith.mulf %54, %39 : vector<8x32xf32>
    %65 = arith.addf %63, %64 : vector<8x32xf32>
    %c2_i32 = arith.constant 2 : i32
    %66 = arith.index_cast %c2_i32 : i32 to index
    %c0_24 = arith.constant 0 : index
    %c0_25 = arith.constant 0 : index
    %67 = vector.load %arg9[%66, %c0_24, %c0_25] : memref<8x8x96xf32, #tpu.memory_space<vmem>>, vector<1x8x96xf32>
    %68 = vector.shape_cast %67 : vector<1x8x96xf32> to vector<8x96xf32>
    %69 = arith.truncf %65 : vector<8x32xf32> to vector<8x32xbf16>
    %cst_26 = arith.constant dense<0.000000e+00> : vector<8x96xf32>
    %70 = tpu.matmul %69, %9, %cst_26 {dimension_numbers = #tpu.dot_dimension_numbers<[1], [0], [0], [1], [0, 0, 1, 1], [], []>} : vector<8x32xbf16>, vector<32x96xbf16>, vector<8x96xf32> -> vector<8x96xf32>
    %71 = vector.extract_strided_slice %68 {offsets = [0, 0], sizes = [8, 64], strides = [1, 1]} : vector<8x96xf32> to vector<8x64xf32>
    %72 = vector.extract_strided_slice %70 {offsets = [0, 0], sizes = [8, 64], strides = [1, 1]} : vector<8x96xf32> to vector<8x64xf32>
    %73 = arith.addf %71, %72 : vector<8x64xf32>
    %74 = arith.negf %73 : vector<8x64xf32>
    %75 = math.exp %74 : vector<8x64xf32>
    %cst_27 = arith.constant 1.000000e+00 : f32
    %76 = vector.broadcast %cst_27 : f32 to vector<8x64xf32>
    %77 = arith.addf %76, %75 : vector<8x64xf32>
    %78 = arith.divf %76, %77 : vector<8x64xf32>
    %79 = vector.extract_strided_slice %78 {offsets = [0, 0], sizes = [8, 32], strides = [1, 1]} : vector<8x64xf32> to vector<8x32xf32>
    %80 = vector.extract_strided_slice %78 {offsets = [0, 32], sizes = [8, 32], strides = [1, 1]} : vector<8x64xf32> to vector<8x32xf32>
    %81 = vector.extract_strided_slice %68 {offsets = [0, 64], sizes = [8, 32], strides = [1, 1]} : vector<8x96xf32> to vector<8x32xf32>
    %82 = vector.extract_strided_slice %70 {offsets = [0, 64], sizes = [8, 32], strides = [1, 1]} : vector<8x96xf32> to vector<8x32xf32>
    %83 = arith.addf %82, %12 : vector<8x32xf32>
    %84 = arith.mulf %79, %83 : vector<8x32xf32>
    %85 = arith.addf %81, %84 : vector<8x32xf32>
    %86 = math.tanh %85 : vector<8x32xf32>
    %cst_28 = arith.constant 1.000000e+00 : f32
    %87 = vector.broadcast %cst_28 : f32 to vector<8x32xf32>
    %88 = arith.subf %87, %80 : vector<8x32xf32>
    %89 = arith.mulf %88, %86 : vector<8x32xf32>
    %90 = arith.mulf %80, %65 : vector<8x32xf32>
    %91 = arith.addf %89, %90 : vector<8x32xf32>
    %c3_i32 = arith.constant 3 : i32
    %92 = arith.index_cast %c3_i32 : i32 to index
    %c0_29 = arith.constant 0 : index
    %c0_30 = arith.constant 0 : index
    %93 = vector.load %arg9[%92, %c0_29, %c0_30] : memref<8x8x96xf32, #tpu.memory_space<vmem>>, vector<1x8x96xf32>
    %94 = vector.shape_cast %93 : vector<1x8x96xf32> to vector<8x96xf32>
    %95 = arith.truncf %91 : vector<8x32xf32> to vector<8x32xbf16>
    %cst_31 = arith.constant dense<0.000000e+00> : vector<8x96xf32>
    %96 = tpu.matmul %95, %9, %cst_31 {dimension_numbers = #tpu.dot_dimension_numbers<[1], [0], [0], [1], [0, 0, 1, 1], [], []>} : vector<8x32xbf16>, vector<32x96xbf16>, vector<8x96xf32> -> vector<8x96xf32>
    %97 = vector.extract_strided_slice %94 {offsets = [0, 0], sizes = [8, 64], strides = [1, 1]} : vector<8x96xf32> to vector<8x64xf32>
    %98 = vector.extract_strided_slice %96 {offsets = [0, 0], sizes = [8, 64], strides = [1, 1]} : vector<8x96xf32> to vector<8x64xf32>
    %99 = arith.addf %97, %98 : vector<8x64xf32>
    %100 = arith.negf %99 : vector<8x64xf32>
    %101 = math.exp %100 : vector<8x64xf32>
    %cst_32 = arith.constant 1.000000e+00 : f32
    %102 = vector.broadcast %cst_32 : f32 to vector<8x64xf32>
    %103 = arith.addf %102, %101 : vector<8x64xf32>
    %104 = arith.divf %102, %103 : vector<8x64xf32>
    %105 = vector.extract_strided_slice %104 {offsets = [0, 0], sizes = [8, 32], strides = [1, 1]} : vector<8x64xf32> to vector<8x32xf32>
    %106 = vector.extract_strided_slice %104 {offsets = [0, 32], sizes = [8, 32], strides = [1, 1]} : vector<8x64xf32> to vector<8x32xf32>
    %107 = vector.extract_strided_slice %94 {offsets = [0, 64], sizes = [8, 32], strides = [1, 1]} : vector<8x96xf32> to vector<8x32xf32>
    %108 = vector.extract_strided_slice %96 {offsets = [0, 64], sizes = [8, 32], strides = [1, 1]} : vector<8x96xf32> to vector<8x32xf32>
    %109 = arith.addf %108, %12 : vector<8x32xf32>
    %110 = arith.mulf %105, %109 : vector<8x32xf32>
    %111 = arith.addf %107, %110 : vector<8x32xf32>
    %112 = math.tanh %111 : vector<8x32xf32>
    %cst_33 = arith.constant 1.000000e+00 : f32
    %113 = vector.broadcast %cst_33 : f32 to vector<8x32xf32>
    %114 = arith.subf %113, %106 : vector<8x32xf32>
    %115 = arith.mulf %114, %112 : vector<8x32xf32>
    %116 = arith.mulf %106, %91 : vector<8x32xf32>
    %117 = arith.addf %115, %116 : vector<8x32xf32>
    %c4_i32 = arith.constant 4 : i32
    %118 = arith.index_cast %c4_i32 : i32 to index
    %c0_34 = arith.constant 0 : index
    %c0_35 = arith.constant 0 : index
    %119 = vector.load %arg9[%118, %c0_34, %c0_35] : memref<8x8x96xf32, #tpu.memory_space<vmem>>, vector<1x8x96xf32>
    %120 = vector.shape_cast %119 : vector<1x8x96xf32> to vector<8x96xf32>
    %121 = arith.truncf %117 : vector<8x32xf32> to vector<8x32xbf16>
    %cst_36 = arith.constant dense<0.000000e+00> : vector<8x96xf32>
    %122 = tpu.matmul %121, %9, %cst_36 {dimension_numbers = #tpu.dot_dimension_numbers<[1], [0], [0], [1], [0, 0, 1, 1], [], []>} : vector<8x32xbf16>, vector<32x96xbf16>, vector<8x96xf32> -> vector<8x96xf32>
    %123 = vector.extract_strided_slice %120 {offsets = [0, 0], sizes = [8, 64], strides = [1, 1]} : vector<8x96xf32> to vector<8x64xf32>
    %124 = vector.extract_strided_slice %122 {offsets = [0, 0], sizes = [8, 64], strides = [1, 1]} : vector<8x96xf32> to vector<8x64xf32>
    %125 = arith.addf %123, %124 : vector<8x64xf32>
    %126 = arith.negf %125 : vector<8x64xf32>
    %127 = math.exp %126 : vector<8x64xf32>
    %cst_37 = arith.constant 1.000000e+00 : f32
    %128 = vector.broadcast %cst_37 : f32 to vector<8x64xf32>
    %129 = arith.addf %128, %127 : vector<8x64xf32>
    %130 = arith.divf %128, %129 : vector<8x64xf32>
    %131 = vector.extract_strided_slice %130 {offsets = [0, 0], sizes = [8, 32], strides = [1, 1]} : vector<8x64xf32> to vector<8x32xf32>
    %132 = vector.extract_strided_slice %130 {offsets = [0, 32], sizes = [8, 32], strides = [1, 1]} : vector<8x64xf32> to vector<8x32xf32>
    %133 = vector.extract_strided_slice %120 {offsets = [0, 64], sizes = [8, 32], strides = [1, 1]} : vector<8x96xf32> to vector<8x32xf32>
    %134 = vector.extract_strided_slice %122 {offsets = [0, 64], sizes = [8, 32], strides = [1, 1]} : vector<8x96xf32> to vector<8x32xf32>
    %135 = arith.addf %134, %12 : vector<8x32xf32>
    %136 = arith.mulf %131, %135 : vector<8x32xf32>
    %137 = arith.addf %133, %136 : vector<8x32xf32>
    %138 = math.tanh %137 : vector<8x32xf32>
    %cst_38 = arith.constant 1.000000e+00 : f32
    %139 = vector.broadcast %cst_38 : f32 to vector<8x32xf32>
    %140 = arith.subf %139, %132 : vector<8x32xf32>
    %141 = arith.mulf %140, %138 : vector<8x32xf32>
    %142 = arith.mulf %132, %117 : vector<8x32xf32>
    %143 = arith.addf %141, %142 : vector<8x32xf32>
    %c5_i32 = arith.constant 5 : i32
    %144 = arith.index_cast %c5_i32 : i32 to index
    %c0_39 = arith.constant 0 : index
    %c0_40 = arith.constant 0 : index
    %145 = vector.load %arg9[%144, %c0_39, %c0_40] : memref<8x8x96xf32, #tpu.memory_space<vmem>>, vector<1x8x96xf32>
    %146 = vector.shape_cast %145 : vector<1x8x96xf32> to vector<8x96xf32>
    %147 = arith.truncf %143 : vector<8x32xf32> to vector<8x32xbf16>
    %cst_41 = arith.constant dense<0.000000e+00> : vector<8x96xf32>
    %148 = tpu.matmul %147, %9, %cst_41 {dimension_numbers = #tpu.dot_dimension_numbers<[1], [0], [0], [1], [0, 0, 1, 1], [], []>} : vector<8x32xbf16>, vector<32x96xbf16>, vector<8x96xf32> -> vector<8x96xf32>
    %149 = vector.extract_strided_slice %146 {offsets = [0, 0], sizes = [8, 64], strides = [1, 1]} : vector<8x96xf32> to vector<8x64xf32>
    %150 = vector.extract_strided_slice %148 {offsets = [0, 0], sizes = [8, 64], strides = [1, 1]} : vector<8x96xf32> to vector<8x64xf32>
    %151 = arith.addf %149, %150 : vector<8x64xf32>
    %152 = arith.negf %151 : vector<8x64xf32>
    %153 = math.exp %152 : vector<8x64xf32>
    %cst_42 = arith.constant 1.000000e+00 : f32
    %154 = vector.broadcast %cst_42 : f32 to vector<8x64xf32>
    %155 = arith.addf %154, %153 : vector<8x64xf32>
    %156 = arith.divf %154, %155 : vector<8x64xf32>
    %157 = vector.extract_strided_slice %156 {offsets = [0, 0], sizes = [8, 32], strides = [1, 1]} : vector<8x64xf32> to vector<8x32xf32>
    %158 = vector.extract_strided_slice %156 {offsets = [0, 32], sizes = [8, 32], strides = [1, 1]} : vector<8x64xf32> to vector<8x32xf32>
    %159 = vector.extract_strided_slice %146 {offsets = [0, 64], sizes = [8, 32], strides = [1, 1]} : vector<8x96xf32> to vector<8x32xf32>
    %160 = vector.extract_strided_slice %148 {offsets = [0, 64], sizes = [8, 32], strides = [1, 1]} : vector<8x96xf32> to vector<8x32xf32>
    %161 = arith.addf %160, %12 : vector<8x32xf32>
    %162 = arith.mulf %157, %161 : vector<8x32xf32>
    %163 = arith.addf %159, %162 : vector<8x32xf32>
    %164 = math.tanh %163 : vector<8x32xf32>
    %cst_43 = arith.constant 1.000000e+00 : f32
    %165 = vector.broadcast %cst_43 : f32 to vector<8x32xf32>
    %166 = arith.subf %165, %158 : vector<8x32xf32>
    %167 = arith.mulf %166, %164 : vector<8x32xf32>
    %168 = arith.mulf %158, %143 : vector<8x32xf32>
    %169 = arith.addf %167, %168 : vector<8x32xf32>
    %c6_i32 = arith.constant 6 : i32
    %170 = arith.index_cast %c6_i32 : i32 to index
    %c0_44 = arith.constant 0 : index
    %c0_45 = arith.constant 0 : index
    %171 = vector.load %arg9[%170, %c0_44, %c0_45] : memref<8x8x96xf32, #tpu.memory_space<vmem>>, vector<1x8x96xf32>
    %172 = vector.shape_cast %171 : vector<1x8x96xf32> to vector<8x96xf32>
    %173 = arith.truncf %169 : vector<8x32xf32> to vector<8x32xbf16>
    %cst_46 = arith.constant dense<0.000000e+00> : vector<8x96xf32>
    %174 = tpu.matmul %173, %9, %cst_46 {dimension_numbers = #tpu.dot_dimension_numbers<[1], [0], [0], [1], [0, 0, 1, 1], [], []>} : vector<8x32xbf16>, vector<32x96xbf16>, vector<8x96xf32> -> vector<8x96xf32>
    %175 = vector.extract_strided_slice %172 {offsets = [0, 0], sizes = [8, 64], strides = [1, 1]} : vector<8x96xf32> to vector<8x64xf32>
    %176 = vector.extract_strided_slice %174 {offsets = [0, 0], sizes = [8, 64], strides = [1, 1]} : vector<8x96xf32> to vector<8x64xf32>
    %177 = arith.addf %175, %176 : vector<8x64xf32>
    %178 = arith.negf %177 : vector<8x64xf32>
    %179 = math.exp %178 : vector<8x64xf32>
    %cst_47 = arith.constant 1.000000e+00 : f32
    %180 = vector.broadcast %cst_47 : f32 to vector<8x64xf32>
    %181 = arith.addf %180, %179 : vector<8x64xf32>
    %182 = arith.divf %180, %181 : vector<8x64xf32>
    %183 = vector.extract_strided_slice %182 {offsets = [0, 0], sizes = [8, 32], strides = [1, 1]} : vector<8x64xf32> to vector<8x32xf32>
    %184 = vector.extract_strided_slice %182 {offsets = [0, 32], sizes = [8, 32], strides = [1, 1]} : vector<8x64xf32> to vector<8x32xf32>
    %185 = vector.extract_strided_slice %172 {offsets = [0, 64], sizes = [8, 32], strides = [1, 1]} : vector<8x96xf32> to vector<8x32xf32>
    %186 = vector.extract_strided_slice %174 {offsets = [0, 64], sizes = [8, 32], strides = [1, 1]} : vector<8x96xf32> to vector<8x32xf32>
    %187 = arith.addf %186, %12 : vector<8x32xf32>
    %188 = arith.mulf %183, %187 : vector<8x32xf32>
    %189 = arith.addf %185, %188 : vector<8x32xf32>
    %190 = math.tanh %189 : vector<8x32xf32>
    %cst_48 = arith.constant 1.000000e+00 : f32
    %191 = vector.broadcast %cst_48 : f32 to vector<8x32xf32>
    %192 = arith.subf %191, %184 : vector<8x32xf32>
    %193 = arith.mulf %192, %190 : vector<8x32xf32>
    %194 = arith.mulf %184, %169 : vector<8x32xf32>
    %195 = arith.addf %193, %194 : vector<8x32xf32>
    %c7_i32 = arith.constant 7 : i32
    %196 = arith.index_cast %c7_i32 : i32 to index
    %c0_49 = arith.constant 0 : index
    %c0_50 = arith.constant 0 : index
    %197 = vector.load %arg9[%196, %c0_49, %c0_50] : memref<8x8x96xf32, #tpu.memory_space<vmem>>, vector<1x8x96xf32>
    %198 = vector.shape_cast %197 : vector<1x8x96xf32> to vector<8x96xf32>
    %199 = arith.truncf %195 : vector<8x32xf32> to vector<8x32xbf16>
    %cst_51 = arith.constant dense<0.000000e+00> : vector<8x96xf32>
    %200 = tpu.matmul %199, %9, %cst_51 {dimension_numbers = #tpu.dot_dimension_numbers<[1], [0], [0], [1], [0, 0, 1, 1], [], []>} : vector<8x32xbf16>, vector<32x96xbf16>, vector<8x96xf32> -> vector<8x96xf32>
    %201 = vector.extract_strided_slice %198 {offsets = [0, 0], sizes = [8, 64], strides = [1, 1]} : vector<8x96xf32> to vector<8x64xf32>
    %202 = vector.extract_strided_slice %200 {offsets = [0, 0], sizes = [8, 64], strides = [1, 1]} : vector<8x96xf32> to vector<8x64xf32>
    %203 = arith.addf %201, %202 : vector<8x64xf32>
    %204 = arith.negf %203 : vector<8x64xf32>
    %205 = math.exp %204 : vector<8x64xf32>
    %cst_52 = arith.constant 1.000000e+00 : f32
    %206 = vector.broadcast %cst_52 : f32 to vector<8x64xf32>
    %207 = arith.addf %206, %205 : vector<8x64xf32>
    %208 = arith.divf %206, %207 : vector<8x64xf32>
    %209 = vector.extract_strided_slice %208 {offsets = [0, 0], sizes = [8, 32], strides = [1, 1]} : vector<8x64xf32> to vector<8x32xf32>
    %210 = vector.extract_strided_slice %208 {offsets = [0, 32], sizes = [8, 32], strides = [1, 1]} : vector<8x64xf32> to vector<8x32xf32>
    %211 = vector.extract_strided_slice %198 {offsets = [0, 64], sizes = [8, 32], strides = [1, 1]} : vector<8x96xf32> to vector<8x32xf32>
    %212 = vector.extract_strided_slice %200 {offsets = [0, 64], sizes = [8, 32], strides = [1, 1]} : vector<8x96xf32> to vector<8x32xf32>
    %213 = arith.addf %212, %12 : vector<8x32xf32>
    %214 = arith.mulf %209, %213 : vector<8x32xf32>
    %215 = arith.addf %211, %214 : vector<8x32xf32>
    %216 = math.tanh %215 : vector<8x32xf32>
    %cst_53 = arith.constant 1.000000e+00 : f32
    %217 = vector.broadcast %cst_53 : f32 to vector<8x32xf32>
    %218 = arith.subf %217, %210 : vector<8x32xf32>
    %219 = arith.mulf %218, %216 : vector<8x32xf32>
    %220 = arith.mulf %210, %195 : vector<8x32xf32>
    %221 = arith.addf %219, %220 : vector<8x32xf32>
    %c8_i32 = arith.constant 8 : i32
    %222 = arith.truncf %221 : vector<8x32xf32> to vector<8x32xbf16>
    %c0_54 = arith.constant 0 : index
    %c0_55 = arith.constant 0 : index
    %223 = vector.load %arg6[%c0_54, %c0_55] : memref<32x128xbf16, #tpu.memory_space<vmem>>, vector<32x128xbf16>
    %cst_56 = arith.constant dense<0.000000e+00> : vector<8x128xf32>
    %224 = tpu.matmul %222, %223, %cst_56 {dimension_numbers = #tpu.dot_dimension_numbers<[1], [0], [0], [1], [0, 0, 1, 1], [], []>} : vector<8x32xbf16>, vector<32x128xbf16>, vector<8x128xf32> -> vector<8x128xf32>
    %c0_57 = arith.constant 0 : index
    %c0_58 = arith.constant 0 : index
    %225 = vector.load %arg7[%c0_57, %c0_58] : memref<1x128xf32, #tpu.memory_space<vmem>>, vector<1x128xf32>
    %226 = vector.broadcast %225 : vector<1x128xf32> to vector<8x128xf32>
    %227 = arith.addf %224, %226 : vector<8x128xf32>
    %228 = arith.mulf %227, %227 : vector<8x128xf32>
    %cst_59 = arith.constant dense<0.000000e+00> : vector<8xf32>
    %229 = vector.multi_reduction <add>, %228, %cst_59 [1] : vector<8x128xf32> to vector<8xf32>
    %230 = vector.shape_cast %229 : vector<8xf32> to vector<8x1xf32>
    %cst_60 = arith.constant 1.000000e-24 : f32
    %231 = vector.broadcast %cst_60 : f32 to vector<8x1xf32>
    %232 = arith.maximumf %230, %231 : vector<8x1xf32>
    %233 = math.rsqrt %232 : vector<8x1xf32>
    %234 = vector.broadcast %233 : vector<8x1xf32> to vector<8x128xf32>
    %235 = arith.mulf %227, %234 : vector<8x128xf32>
    %c0_61 = arith.constant 0 : index
    %c0_62 = arith.constant 0 : index
    %236 = vector.load %arg8[%c0_61, %c0_62] : memref<8x128xf32, #tpu.memory_space<vmem>>, vector<8x128xf32>
    tpu.vector_store %arg8[%c0_61, %c0_62], %235 {strides = array<i32>} : memref<8x128xf32, #tpu.memory_space<vmem>>, vector<8x128xf32>,
    return
  }
  func.func @transform_0(%arg0: i32) -> (i32, i32, i32) {
    %c0_i32 = arith.constant 0 : i32
    %c0_i32_0 = arith.constant 0 : i32
    %c0_i32_1 = arith.constant 0 : i32
    return %c0_i32, %arg0, %c0_i32_0 : i32, i32, i32
  }
  func.func @transform_1(%arg0: i32) -> (i32, i32) {
    %c0_i32 = arith.constant 0 : i32
    %c0_i32_0 = arith.constant 0 : i32
    %c0_i32_1 = arith.constant 0 : i32
    return %c0_i32, %c0_i32_0 : i32, i32
  }
  func.func @transform_2(%arg0: i32) -> (i32, i32) {
    %c0_i32 = arith.constant 0 : i32
    %c0_i32_0 = arith.constant 0 : i32
    %c0_i32_1 = arith.constant 0 : i32
    return %c0_i32, %c0_i32_0 : i32, i32
  }
  func.func @transform_3(%arg0: i32) -> (i32, i32) {
    %c0_i32 = arith.constant 0 : i32
    %c0_i32_0 = arith.constant 0 : i32
    %c0_i32_1 = arith.constant 0 : i32
    return %c0_i32, %c0_i32_0 : i32, i32
  }
  func.func @transform_4(%arg0: i32) -> (i32, i32) {
    %c0_i32 = arith.constant 0 : i32
    %c0_i32_0 = arith.constant 0 : i32
    %c0_i32_1 = arith.constant 0 : i32
    return %c0_i32, %c0_i32_0 : i32, i32
  }
  func.func @transform_5(%arg0: i32) -> (i32, i32) {
    %c0_i32 = arith.constant 0 : i32
    %c0_i32_0 = arith.constant 0 : i32
    %c0_i32_1 = arith.constant 0 : i32
    return %c0_i32, %c0_i32_0 : i32, i32
  }
  func.func @transform_6(%arg0: i32) -> (i32, i32) {
    %c0_i32 = arith.constant 0 : i32
    %c0_i32_0 = arith.constant 0 : i32
    %c0_i32_1 = arith.constant 0 : i32
    return %c0_i32, %c0_i32_0 : i32, i32
  }
  func.func @transform_7(%arg0: i32) -> (i32, i32) {
    %c0_i32 = arith.constant 0 : i32
    %c0_i32_0 = arith.constant 0 : i32
    return %arg0, %c0_i32 : i32, i32
  }
}

</mosaic_0001>

<llo_original>
// kernel: topkid_trinet.1
$region0: #{topkid_trinet.1}
  #allocation0 [shape = 'u32[]', space=smem, size = 0x4, offset = 0x4, fixed_abs, tag = 'smem constant byte address 0x4 - core index']
  #allocation1 [shape = 'u32[144,128]{1,0:T(1,128)}', space=vmem, size = 0x12000, scoped, tag = 'internal scratch']
  #allocation2 [shape = 'f32[8,8,96]{2,1,0:T(8,128)}', space=vmem, size = 0x8000, scoped, tag = 'scratch operand']
  %s0 = inlined_call_operand.vmem [shape: bf16[8,8,40], index: 0, kind: input, shape index: {}]
  %s1 = inlined_call_operand.vmem [shape: bf16[40,96], index: 1, kind: input, shape index: {}]
  %s2 = inlined_call_operand.vmem [shape: bf16[32,96], index: 2, kind: input, shape index: {}]
  %s3 = inlined_call_operand.vmem [shape: f32[1,96], index: 3, kind: input, shape index: {}]
  %s4 = inlined_call_operand.vmem [shape: f32[1,32], index: 4, kind: input, shape index: {}]
  %s5 = inlined_call_operand.vmem [shape: bf16[32,128], index: 5, kind: input, shape index: {}]
  %s6 = inlined_call_operand.vmem [shape: f32[1,128], index: 6, kind: input, shape index: {}]
  %s7 = inlined_call_operand.vmem [shape: f32[8,128], index: 7, kind: output, shape index: {}]
  %s8 = sld [smem:[#allocation0]]
  $region38: #{topkid_trinet.1} parent=0
    _
  %s10 = ssub.s32 1, %s8
  %s11 = scalar_select 0, %s10, %s8
  // Predicated region
  $region2: #{topkid_trinet.1} parent=0 // pred_check
    _
  $region3: #{topkid_trinet.1} parent=0 // pred_check_branch
    %13 = sbr.rel (0) target = $region5
  $region4: #{topkid_trinet.1} parent=0 // pred_region
    _
  $region5: #{topkid_trinet.1} parent=0 // pred_fallthru
    _
  // Predicated region
  $region6: #{topkid_trinet.1} parent=0 // pred_check
    _
  $region7: #{topkid_trinet.1} parent=0 // pred_check_branch
    %15 = sbr.rel (0) target = $region9
  $region8: #{topkid_trinet.1} parent=0 // pred_region
    _
  $region9: #{topkid_trinet.1} parent=0 // pred_fallthru
    _
  // Predicated region
  $region10: #{topkid_trinet.1} parent=0 // pred_check
    _
  $region11: #{topkid_trinet.1} parent=0 // pred_check_branch
    %17 = sbr.rel (0) target = $region13
  $region12: #{topkid_trinet.1} parent=0 // pred_region
    _
  $region13: #{topkid_trinet.1} parent=0 // pred_fallthru
    _
  // Predicated region
  $region14: #{topkid_trinet.1} parent=0 // pred_check
    _
  $region15: #{topkid_trinet.1} parent=0 // pred_check_branch
    %19 = sbr.rel (0) target = $region17
  $region16: #{topkid_trinet.1} parent=0 // pred_region
    _
  $region17: #{topkid_trinet.1} parent=0 // pred_fallthru
    _
  // Predicated region
  $region18: #{topkid_trinet.1} parent=0 // pred_check
    _
  $region19: #{topkid_trinet.1} parent=0 // pred_check_branch
    %21 = sbr.rel (0) target = $region21
  $region20: #{topkid_trinet.1} parent=0 // pred_region
    _
  $region21: #{topkid_trinet.1} parent=0 // pred_fallthru
    _
  // Predicated region
  $region22: #{topkid_trinet.1} parent=0 // pred_check
    _
  $region23: #{topkid_trinet.1} parent=0 // pred_check_branch
    %23 = sbr.rel (0) target = $region25
  $region24: #{topkid_trinet.1} parent=0 // pred_region
    _
  $region25: #{topkid_trinet.1} parent=0 // pred_fallthru
    _
  // Predicated region
  $region26: #{topkid_trinet.1} parent=0 // pred_check
    _
  $region27: #{topkid_trinet.1} parent=0 // pred_check_branch
    %25 = sbr.rel (0) target = $region29
  $region28: #{topkid_trinet.1} parent=0 // pred_region
    _
  $region29: #{topkid_trinet.1} parent=0 // pred_fallthru
    _
  %v27 = vld [vmem:[%s0] sm:$0xf]
  %v28 = vld [vmem:[%s0 + $0x4] sm:$0xf]
  %v29 = vld [vmem:[%s0 + $0x8] sm:$0xf]
  %v30 = vld [vmem:[%s0 + $0xc] sm:$0xf]
  %v31 = vld [vmem:[%s0 + $0x10] sm:$0xf]
  %v32 = vld [vmem:[%s0 + $0x14] sm:$0xf]
  %v33 = vld [vmem:[%s0 + $0x18] sm:$0xf]
  %v34 = vld [vmem:[%s0 + $0x1c] sm:$0xf]
  %v35 = vld [vmem:[%s1] sm:$0xf]
  %v36 = vld [vmem:[%s1 + $0x4] sm:$0xf]
  %v37 = vld [vmem:[%s1 + $0x8] sm:$0xf]
  %v38 = vld [vmem:[%s1 + $0xc] sm:$0xf]
  %v39 = vld [vmem:[%s1 + $0x10] sm:$0xf]
  %v40 = vld [vmem:[%s3] sm:$0x1]
  %v42 = vlaneseq
  %v43 = vshrl.u32 %v42, 7
  %v44 = vsub.s32 0, %v43
  %v45 = vrot.slane %v40, %v44
  %v55 = vunpack.c.l.b16 %v27
  %v56 = vunpack.c.l.b16 %v28
  %v57 = vunpack.c.l.b16 %v29
  %v58 = vunpack.c.l.b16 %v30
  %v59 = vunpack.c.l.b16 %v31
  %v60 = vunpack.c.l.b16 %v32
  %v61 = vunpack.c.l.b16 %v33
  %v62 = vunpack.c.l.b16 %v34
  %v63 = vpack.c.b16 %v56, %v55
  %v64 = vpack.c.b16 %v58, %v57
  %v65 = vpack.c.b16 %v60, %v59
  %v66 = vpack.c.b16 %v62, %v61
  %v72 = vunpack.c.l.b16 %v35
  %v73 = vunpack.c.l.b16 %v36
  %v74 = vunpack.c.l.b16 %v37
  %v75 = vunpack.c.l.b16 %v38
  %v76 = vunpack.c.l.b16 %v39
  %v77 = vpack.c.b16 %v73, %v72
  %v78 = vpack.c.b16 %v75, %v74
  %v79 = vpack.c.b16 %v76, %v76
  %vm82 = vcmask 326656
  %v84 = vsel %vm82, %v63, 0
  %v87 = vsel %vm82, %v64, 0
  %v90 = vsel %vm82, %v65, 0
  %v93 = vsel %vm82, %v66, 0
  %vm95 = vcmask 1043456
  %v97 = vsel %vm95, %v79, 0
  %99 = vmatprep.subr.bf16.mxu0 0
  %100 = vmatpush1.bf16.msra.mxu0 %v77
  %101 = vmatprep.subr.bf16.mxu0 0
  %102 = vmatpush1.bf16.msra.mxu0 %v78
  %103 = vmatprep.subr.bf16.mxu0 0
  %104 = vmatpush1.bf16.msra.mxu0 %v97
  %105 = vmatprep.subr.bf16.mxu0 0
  %106 = vmatpush1.bf16.msra.mxu0 0
  %107 = vmatprep.subr.bf16.mxu0 0
  %108 = vmatpush1.bf16.msra.mxu0 0
  %109 = vmatprep.subr.bf16.mxu0 0
  %110 = vmatpush1.bf16.msra.mxu0 0
  %111 = vmatprep.subr.bf16.mxu0 0
  %112 = vmatpush1.bf16.msra.mxu0 0
  %113 = vmatprep.subr.bf16.mxu0 0
  %114 = vmatpush1.bf16.msra.mxu0 0
  %115 = vmatprep.subr.bf16.mxu0 0
  %116 = vmatpush1.bf16.msra.mxu0 0
  %117 = vmatprep.subr.bf16.mxu0 0
  %118 = vmatpush1.bf16.msra.mxu0 0
  %119 = vmatprep.subr.bf16.mxu0 0
  %120 = vmatpush1.bf16.msra.mxu0 0
  %121 = vmatprep.subr.bf16.mxu0 0
  %122 = vmatpush1.bf16.msra.mxu0 0
  %123 = vmatprep.subr.bf16.mxu0 0
  %124 = vmatpush1.bf16.msra.mxu0 0
  %125 = vmatprep.subr.bf16.mxu0 0
  %126 = vmatpush1.bf16.msra.mxu0 0
  %127 = vmatprep.subr.bf16.mxu0 0
  %128 = vmatpush1.bf16.msra.mxu0 0
  %129 = vmatprep.subr.bf16.mxu0 0
  %130 = vmatpush1.bf16.msra.mxu0 0
  %131 = vmatprep.mubr.bf16.mxu0 0
  %132 = vmatmul.mubr.bf16.gmra.mrb[0].mxu0 %v84
  %v133 = vpop.f32.mrb[0].mxu0
  %v134 = vadd.f32 %v45, %v133
  %v135 = vpop.f32.mrb[0].mxu0
  %v136 = vpop.f32.mrb[0].mxu0
  %v137 = vadd.f32 %v45, %v136
  %v138 = vpop.f32.mrb[0].mxu0
  %139 = vmatprep.mubr.bf16.mxu0 0
  %140 = vmatmul.mubr.bf16.gmra.mrb[0].mxu0 %v87
  %v141 = vpop.f32.mrb[0].mxu0
  %v142 = vadd.f32 %v45, %v141
  %v143 = vpop.f32.mrb[0].mxu0
  %v144 = vpop.f32.mrb[0].mxu0
  %v145 = vadd.f32 %v45, %v144
  %v146 = vpop.f32.mrb[0].mxu0
  %147 = vmatprep.mubr.bf16.mxu0 0
  %148 = vmatmul.mubr.bf16.gmra.mrb[0].mxu0 %v90
  %v149 = vpop.f32.mrb[0].mxu0
  %v150 = vadd.f32 %v45, %v149
  %v151 = vpop.f32.mrb[0].mxu0
  %v152 = vpop.f32.mrb[0].mxu0
  %v153 = vadd.f32 %v45, %v152
  %v154 = vpop.f32.mrb[0].mxu0
  %155 = vmatprep.mubr.bf16.mxu0 0
  %156 = vmatmul.mubr.bf16.gmra.mrb[0].mxu0 %v93
  %v157 = vpop.f32.mrb[0].mxu0
  %v158 = vadd.f32 %v45, %v157
  %v159 = vpop.f32.mrb[0].mxu0
  %v160 = vpop.f32.mrb[0].mxu0
  %v161 = vadd.f32 %v45, %v160
  %v162 = vpop.f32.mrb[0].mxu0
  %163 = vdwg.mxu0
  %vm164 = vcmask 785408
  %165 = vst.msk [vmem:[#allocation2] sm:$0xff] %vm164, %v134
  %166 = vst.msk [vmem:[#allocation2 + $0x8] sm:$0xff] %vm164, %v137
  %167 = vst.msk [vmem:[#allocation2 + $0x10] sm:$0xff] %vm164, %v142
  %168 = vst.msk [vmem:[#allocation2 + $0x18] sm:$0xff] %vm164, %v145
  %169 = vst.msk [vmem:[#allocation2 + $0x20] sm:$0xff] %vm164, %v150
  %170 = vst.msk [vmem:[#allocation2 + $0x28] sm:$0xff] %vm164, %v153
  %171 = vst.msk [vmem:[#allocation2 + $0x30] sm:$0xff] %vm164, %v158
  %172 = vst.msk [vmem:[#allocation2 + $0x38] sm:$0xff] %vm164, %v161
  %v173 = vld [vmem:[%s2] sm:$0xf]
  %v174 = vld [vmem:[%s2 + $0x4] sm:$0xf]
  %v175 = vld [vmem:[%s2 + $0x8] sm:$0xf]
  %v176 = vld [vmem:[%s2 + $0xc] sm:$0xf]
  %v177 = vld [vmem:[%s4] sm:$0x1]
  %v179 = vlaneseq
  %v180 = vshrl.u32 %v179, 7
  %v181 = vsub.s32 0, %v180
  %v182 = vrot.slane %v177, %v181
  %v183 = vld [vmem:[#allocation2] sm:$0xff]
  %v188 = vunpack.c.l.b16 %v173
  %v189 = vunpack.c.l.b16 %v174
  %v190 = vunpack.c.l.b16 %v175
  %v191 = vunpack.c.l.b16 %v176
  %v192 = vpack.c.b16 %v189, %v188
  %v193 = vpack.c.b16 %v191, %v190
  %vm196 = vcmask 261120
  %v198 = vsel %vm196, 0, 0
  %200 = vmatprep.subr.bf16.mxu0 0
  %201 = vmatpush1.bf16.msra.mxu0 %v192
  %202 = vmatprep.subr.bf16.mxu0 0
  %203 = vmatpush1.bf16.msra.mxu0 %v193
  %204 = vmatprep.subr.bf16.mxu0 0
  %205 = vmatpush1.bf16.msra.mxu0 0
  %206 = vmatprep.subr.bf16.mxu0 0
  %207 = vmatpush1.bf16.msra.mxu0 0
  %208 = vmatprep.subr.bf16.mxu0 0
  %209 = vmatpush1.bf16.msra.mxu0 0
  %210 = vmatprep.subr.bf16.mxu0 0
  %211 = vmatpush1.bf16.msra.mxu0 0
  %212 = vmatprep.subr.bf16.mxu0 0
  %213 = vmatpush1.bf16.msra.mxu0 0
  %214 = vmatprep.subr.bf16.mxu0 0
  %215 = vmatpush1.bf16.msra.mxu0 0
  %216 = vmatprep.subr.bf16.mxu0 0
  %217 = vmatpush1.bf16.msra.mxu0 0
  %218 = vmatprep.subr.bf16.mxu0 0
  %219 = vmatpush1.bf16.msra.mxu0 0
  %220 = vmatprep.subr.bf16.mxu0 0
  %221 = vmatpush1.bf16.msra.mxu0 0
  %222 = vmatprep.subr.bf16.mxu0 0
  %223 = vmatpush1.bf16.msra.mxu0 0
  %224 = vmatprep.subr.bf16.mxu0 0
  %225 = vmatpush1.bf16.msra.mxu0 0
  %226 = vmatprep.subr.bf16.mxu0 0
  %227 = vmatpush1.bf16.msra.mxu0 0
  %228 = vmatprep.subr.bf16.mxu0 0
  %229 = vmatpush1.bf16.msra.mxu0 0
  %230 = vmatprep.subr.bf16.mxu0 0
  %231 = vmatpush1.bf16.msra.mxu0 0
  %232 = vmatprep.mubr.bf16.mxu0 0
  %233 = vmatmul.mubr.bf16.gmra.mrb[0].mxu0 %v198
  %v234 = vpop.f32.mrb[0].mxu0
  %v235 = vadd.f32 0.0, %v234
  %v236 = vpop.f32.mrb[0].mxu0
  %v237 = vpop.f32.mrb[0].mxu0
  %v238 = vpop.f32.mrb[0].mxu0
  %239 = vdwg.mxu0
  %v240 = vadd.f32 %v183, %v235
  %v241 = vxor.u32 %v240, 2147483648
  %v242 = vmul.f32 %v241, 1.442695
  %v243 = vpow.pop %v242
  %v244 = vadd.f32 %v243, 1.0
  %v245 = vrcp.pop %v244
  %v246 = vmul.f32 1.0, %v245
  %247 = vrot.lane.b32.xlu0 %v182, 64
  %v248 = vpop.permute.xlu0 %247
  %v250 = vadd.f32 %v235, %v248
  %252 = vrot.lane.b32.xlu0 %v250, 64
  %v253 = vpop.permute.xlu0 %252
  %v255 = vmul.f32 %v246, %v253
  %257 = vrot.lane.b32.xlu0 %v255, 64
  %v258 = vpop.permute.xlu0 %257
  %v260 = vadd.f32 %v183, %v258
  %v261 = vtanh.pop %v260
  %v262 = vsub.f32 1.0, %v246
  %264 = vrot.lane.b32.xlu0 %v261, 96
  %v265 = vpop.permute.xlu0 %264
  %v267 = vmul.f32 %v262, %v265
  %v268 = vmul.f32 %v246, 0.0
  %v269 = vadd.f32 %v267, %v268
  %s270 = scalar_lea.vmem [#allocation2], 8
  %v271 = vld [vmem:[%s270] sm:$0xff]
  %v272 = vpack.c.bf16 %v269, %v269
  %274 = vrot.lane.b32.xlu0 %v272, 96
  %v275 = vpop.permute.xlu0 %274
  %v277 = vsel %vm196, %v275, 0
  %279 = vmatprep.subr.bf16.mxu0 0
  %280 = vmatpush1.bf16.msra.mxu0 %v192
  %281 = vmatprep.subr.bf16.mxu0 0
  %282 = vmatpush1.bf16.msra.mxu0 %v193
  %283 = vmatprep.subr.bf16.mxu0 0
  %284 = vmatpush1.bf16.msra.mxu0 0
  %285 = vmatprep.subr.bf16.mxu0 0
  %286 = vmatpush1.bf16.msra.mxu0 0
  %287 = vmatprep.subr.bf16.mxu0 0
  %288 = vmatpush1.bf16.msra.mxu0 0
  %289 = vmatprep.subr.bf16.mxu0 0
  %290 = vmatpush1.bf16.msra.mxu0 0
  %291 = vmatprep.subr.bf16.mxu0 0
  %292 = vmatpush1.bf16.msra.mxu0 0
  %293 = vmatprep.subr.bf16.mxu0 0
  %294 = vmatpush1.bf16.msra.mxu0 0
  %295 = vmatprep.subr.bf16.mxu0 0
  %296 = vmatpush1.bf16.msra.mxu0 0
  %297 = vmatprep.subr.bf16.mxu0 0
  %298 = vmatpush1.bf16.msra.mxu0 0
  %299 = vmatprep.subr.bf16.mxu0 0
  %300 = vmatpush1.bf16.msra.mxu0 0
  %301 = vmatprep.subr.bf16.mxu0 0
  %302 = vmatpush1.bf16.msra.mxu0 0
  %303 = vmatprep.subr.bf16.mxu0 0
  %304 = vmatpush1.bf16.msra.mxu0 0
  %305 = vmatprep.subr.bf16.mxu0 0
  %306 = vmatpush1.bf16.msra.mxu0 0
  %307 = vmatprep.subr.bf16.mxu0 0
  %308 = vmatpush1.bf16.msra.mxu0 0
  %309 = vmatprep.subr.bf16.mxu0 0
  %310 = vmatpush1.bf16.msra.mxu0 0
  %311 = vmatprep.mubr.bf16.mxu0 0
  %312 = vmatmul.mubr.bf16.gmra.mrb[0].mxu0 %v277
  %v313 = vpop.f32.mrb[0].mxu0
  %v314 = vadd.f32 0.0, %v313
  %v315 = vpop.f32.mrb[0].mxu0
  %v316 = vpop.f32.mrb[0].mxu0
  %v317 = vpop.f32.mrb[0].mxu0
  %318 = vdwg.mxu0
  %v319 = vadd.f32 %v271, %v314
  %v320 = vxor.u32 %v319, 2147483648
  %v321 = vmul.f32 %v320, 1.442695
  %v322 = vpow.pop %v321
  %v323 = vadd.f32 %v322, 1.0
  %v324 = vrcp.pop %v323
  %v325 = vmul.f32 1.0, %v324
  %v326 = vadd.f32 %v314, %v248
  %328 = vrot.lane.b32.xlu0 %v326, 64
  %v329 = vpop.permute.xlu0 %328
  %v331 = vmul.f32 %v325, %v329
  %333 = vrot.lane.b32.xlu0 %v331, 64
  %v334 = vpop.permute.xlu0 %333
  %v336 = vadd.f32 %v271, %v334
  %v337 = vtanh.pop %v336
  %v338 = vsub.f32 1.0, %v325
  %340 = vrot.lane.b32.xlu0 %v337, 96
  %v341 = vpop.permute.xlu0 %340
  %v343 = vmul.f32 %v338, %v341
  %v344 = vmul.f32 %v325, %v269
  %v345 = vadd.f32 %v343, %v344
  %s346 = scalar_lea.vmem [#allocation2], 16
  %v347 = vld [vmem:[%s346] sm:$0xff]
  %v348 = vpack.c.bf16 %v345, %v345
  %350 = vrot.lane.b32.xlu0 %v348, 96
  %v351 = vpop.permute.xlu0 %350
  %v353 = vsel %vm196, %v351, 0
  %355 = vmatprep.subr.bf16.mxu0 0
  %356 = vmatpush1.bf16.msra.mxu0 %v192
  %357 = vmatprep.subr.bf16.mxu0 0
  %358 = vmatpush1.bf16.msra.mxu0 %v193
  %359 = vmatprep.subr.bf16.mxu0 0
  %360 = vmatpush1.bf16.msra.mxu0 0
  %361 = vmatprep.subr.bf16.mxu0 0
  %362 = vmatpush1.bf16.msra.mxu0 0
  %363 = vmatprep.subr.bf16.mxu0 0
  %364 = vmatpush1.bf16.msra.mxu0 0
  %365 = vmatprep.subr.bf16.mxu0 0
  %366 = vmatpush1.bf16.msra.mxu0 0
  %367 = vmatprep.subr.bf16.mxu0 0
  %368 = vmatpush1.bf16.msra.mxu0 0
  %369 = vmatprep.subr.bf16.mxu0 0
  %370 = vmatpush1.bf16.msra.mxu0 0
  %371 = vmatprep.subr.bf16.mxu0 0
  %372 = vmatpush1.bf16.msra.mxu0 0
  %373 = vmatprep.subr.bf16.mxu0 0
  %374 = vmatpush1.bf16.msra.mxu0 0
  %375 = vmatprep.subr.bf16.mxu0 0
  %376 = vmatpush1.bf16.msra.mxu0 0
  %377 = vmatprep.subr.bf16.mxu0 0
  %378 = vmatpush1.bf16.msra.mxu0 0
  %379 = vmatprep.subr.bf16.mxu0 0
  %380 = vmatpush1.bf16.msra.mxu0 0
  %381 = vmatprep.subr.bf16.mxu0 0
  %382 = vmatpush1.bf16.msra.mxu0 0
  %383 = vmatprep.subr.bf16.mxu0 0
  %384 = vmatpush1.bf16.msra.mxu0 0
  %385 = vmatprep.subr.bf16.mxu0 0
  %386 = vmatpush1.bf16.msra.mxu0 0
  %387 = vmatprep.mubr.bf16.mxu0 0
  %388 = vmatmul.mubr.bf16.gmra.mrb[0].mxu0 %v353
  %v389 = vpop.f32.mrb[0].mxu0
  %v390 = vadd.f32 0.0, %v389
  %v391 = vpop.f32.mrb[0].mxu0
  %v392 = vpop.f32.mrb[0].mxu0
  %v393 = vpop.f32.mrb[0].mxu0
  %394 = vdwg.mxu0
  %v395 = vadd.f32 %v347, %v390
  %v396 = vxor.u32 %v395, 2147483648
  %v397 = vmul.f32 %v396, 1.442695
  %v398 = vpow.pop %v397
  %v399 = vadd.f32 %v398, 1.0
  %v400 = vrcp.pop %v399
  %v401 = vmul.f32 1.0, %v400
  %v402 = vadd.f32 %v390, %v248
  %404 = vrot.lane.b32.xlu0 %v402, 64
  %v405 = vpop.permute.xlu0 %404
  %v407 = vmul.f32 %v401, %v405
  %409 = vrot.lane.b32.xlu0 %v407, 64
  %v410 = vpop.permute.xlu0 %409
  %v412 = vadd.f32 %v347, %v410
  %v413 = vtanh.pop %v412
  %v414 = vsub.f32 1.0, %v401
  %416 = vrot.lane.b32.xlu0 %v413, 96
  %v417 = vpop.permute.xlu0 %416
  %v419 = vmul.f32 %v414, %v417
  %v420 = vmul.f32 %v401, %v345
  %v421 = vadd.f32 %v419, %v420
  %s422 = scalar_lea.vmem [#allocation2], 24
  %v423 = vld [vmem:[%s422] sm:$0xff]
  %v424 = vpack.c.bf16 %v421, %v421
  %426 = vrot.lane.b32.xlu0 %v424, 96
  %v427 = vpop.permute.xlu0 %426
  %v429 = vsel %vm196, %v427, 0
  %431 = vmatprep.subr.bf16.mxu0 0
  %432 = vmatpush1.bf16.msra.mxu0 %v192
  %433 = vmatprep.subr.bf16.mxu0 0
  %434 = vmatpush1.bf16.msra.mxu0 %v193
  %435 = vmatprep.subr.bf16.mxu0 0
  %436 = vmatpush1.bf16.msra.mxu0 0
  %437 = vmatprep.subr.bf16.mxu0 0
  %438 = vmatpush1.bf16.msra.mxu0 0
  %439 = vmatprep.subr.bf16.mxu0 0
  %440 = vmatpush1.bf16.msra.mxu0 0
  %441 = vmatprep.subr.bf16.mxu0 0
  %442 = vmatpush1.bf16.msra.mxu0 0
  %443 = vmatprep.subr.bf16.mxu0 0
  %444 = vmatpush1.bf16.msra.mxu0 0
  %445 = vmatprep.subr.bf16.mxu0 0
  %446 = vmatpush1.bf16.msra.mxu0 0
  %447 = vmatprep.subr.bf16.mxu0 0
  %448 = vmatpush1.bf16.msra.mxu0 0
  %449 = vmatprep.subr.bf16.mxu0 0
  %450 = vmatpush1.bf16.msra.mxu0 0
  %451 = vmatprep.subr.bf16.mxu0 0
  %452 = vmatpush1.bf16.msra.mxu0 0
  %453 = vmatprep.subr.bf16.mxu0 0
  %454 = vmatpush1.bf16.msra.mxu0 0
  %455 = vmatprep.subr.bf16.mxu0 0
  %456 = vmatpush1.bf16.msra.mxu0 0
  %457 = vmatprep.subr.bf16.mxu0 0
  %458 = vmatpush1.bf16.msra.mxu0 0
  %459 = vmatprep.subr.bf16.mxu0 0
  %460 = vmatpush1.bf16.msra.mxu0 0
  %461 = vmatprep.subr.bf16.mxu0 0
  %462 = vmatpush1.bf16.msra.mxu0 0
  %463 = vmatprep.mubr.bf16.mxu0 0
  %464 = vmatmul.mubr.bf16.gmra.mrb[0].mxu0 %v429
  %v465 = vpop.f32.mrb[0].mxu0
  %v466 = vadd.f32 0.0, %v465
  %v467 = vpop.f32.mrb[0].mxu0
  %v468 = vpop.f32.mrb[0].mxu0
  %v469 = vpop.f32.mrb[0].mxu0
  %470 = vdwg.mxu0
  %v471 = vadd.f32 %v423, %v466
  %v472 = vxor.u32 %v471, 2147483648
  %v473 = vmul.f32 %v472, 1.442695
  %v474 = vpow.pop %v473
  %v475 = vadd.f32 %v474, 1.0
  %v476 = vrcp.pop %v475
  %v477 = vmul.f32 1.0, %v476
  %v478 = vadd.f32 %v466, %v248
  %480 = vrot.lane.b32.xlu0 %v478, 64
  %v481 = vpop.permute.xlu0 %480
  %v483 = vmul.f32 %v477, %v481
  %485 = vrot.lane.b32.xlu0 %v483, 64
  %v486 = vpop.permute.xlu0 %485
  %v488 = vadd.f32 %v423, %v486
  %v489 = vtanh.pop %v488
  %v490 = vsub.f32 1.0, %v477
  %492 = vrot.lane.b32.xlu0 %v489, 96
  %v493 = vpop.permute.xlu0 %492
  %v495 = vmul.f32 %v490, %v493
  %v496 = vmul.f32 %v477, %v421
  %v497 = vadd.f32 %v495, %v496
  %s498 = scalar_lea.vmem [#allocation2], 32
  %v499 = vld [vmem:[%s498] sm:$0xff]
  %v500 = vpack.c.bf16 %v497, %v497
  %502 = vrot.lane.b32.xlu0 %v500, 96
  %v503 = vpop.permute.xlu0 %502
  %v505 = vsel %vm196, %v503, 0
  %507 = vmatprep.subr.bf16.mxu0 0
  %508 = vmatpush1.bf16.msra.mxu0 %v192
  %509 = vmatprep.subr.bf16.mxu0 0
  %510 = vmatpush1.bf16.msra.mxu0 %v193
  %511 = vmatprep.subr.bf16.mxu0 0
  %512 = vmatpush1.bf16.msra.mxu0 0
  %513 = vmatprep.subr.bf16.mxu0 0
  %514 = vmatpush1.bf16.msra.mxu0 0
  %515 = vmatprep.subr.bf16.mxu0 0
  %516 = vmatpush1.bf16.msra.mxu0 0
  %517 = vmatprep.subr.bf16.mxu0 0
  %518 = vmatpush1.bf16.msra.mxu0 0
  %519 = vmatprep.subr.bf16.mxu0 0
  %520 = vmatpush1.bf16.msra.mxu0 0
  %521 = vmatprep.subr.bf16.mxu0 0
  %522 = vmatpush1.bf16.msra.mxu0 0
  %523 = vmatprep.subr.bf16.mxu0 0
  %524 = vmatpush1.bf16.msra.mxu0 0
  %525 = vmatprep.subr.bf16.mxu0 0
  %526 = vmatpush1.bf16.msra.mxu0 0
  %527 = vmatprep.subr.bf16.mxu0 0
  %528 = vmatpush1.bf16.msra.mxu0 0
  %529 = vmatprep.subr.bf16.mxu0 0
  %530 = vmatpush1.bf16.msra.mxu0 0
  %531 = vmatprep.subr.bf16.mxu0 0
  %532 = vmatpush1.bf16.msra.mxu0 0
  %533 = vmatprep.subr.bf16.mxu0 0
  %534 = vmatpush1.bf16.msra.mxu0 0
  %535 = vmatprep.subr.bf16.mxu0 0
  %536 = vmatpush1.bf16.msra.mxu0 0
  %537 = vmatprep.subr.bf16.mxu0 0
  %538 = vmatpush1.bf16.msra.mxu0 0
  %539 = vmatprep.mubr.bf16.mxu0 0
  %540 = vmatmul.mubr.bf16.gmra.mrb[0].mxu0 %v505
  %v541 = vpop.f32.mrb[0].mxu0
  %v542 = vadd.f32 0.0, %v541
  %v543 = vpop.f32.mrb[0].mxu0
  %v544 = vpop.f32.mrb[0].mxu0
  %v545 = vpop.f32.mrb[0].mxu0
  %546 = vdwg.mxu0
  %v547 = vadd.f32 %v499, %v542
  %v548 = vxor.u32 %v547, 2147483648
  %v549 = vmul.f32 %v548, 1.442695
  %v550 = vpow.pop %v549
  %v551 = vadd.f32 %v550, 1.0
  %v552 = vrcp.pop %v551
  %v553 = vmul.f32 1.0, %v552
  %v554 = vadd.f32 %v542, %v248
  %556 = vrot.lane.b32.xlu0 %v554, 64
  %v557 = vpop.permute.xlu0 %556
  %v559 = vmul.f32 %v553, %v557
  %561 = vrot.lane.b32.xlu0 %v559, 64
  %v562 = vpop.permute.xlu0 %561
  %v564 = vadd.f32 %v499, %v562
  %v565 = vtanh.pop %v564
  %v566 = vsub.f32 1.0, %v553
  %568 = vrot.lane.b32.xlu0 %v565, 96
  %v569 = vpop.permute.xlu0 %568
  %v571 = vmul.f32 %v566, %v569
  %v572 = vmul.f32 %v553, %v497
  %v573 = vadd.f32 %v571, %v572
  %s574 = scalar_lea.vmem [#allocation2], 40
  %v575 = vld [vmem:[%s574] sm:$0xff]
  %v576 = vpack.c.bf16 %v573, %v573
  %578 = vrot.lane.b32.xlu0 %v576, 96
  %v579 = vpop.permute.xlu0 %578
  %v581 = vsel %vm196, %v579, 0
  %583 = vmatprep.subr.bf16.mxu0 0
  %584 = vmatpush1.bf16.msra.mxu0 %v192
  %585 = vmatprep.subr.bf16.mxu0 0
  %586 = vmatpush1.bf16.msra.mxu0 %v193
  %587 = vmatprep.subr.bf16.mxu0 0
  %588 = vmatpush1.bf16.msra.mxu0 0
  %589 = vmatprep.subr.bf16.mxu0 0
  %590 = vmatpush1.bf16.msra.mxu0 0
  %591 = vmatprep.subr.bf16.mxu0 0
  %592 = vmatpush1.bf16.msra.mxu0 0
  %593 = vmatprep.subr.bf16.mxu0 0
  %594 = vmatpush1.bf16.msra.mxu0 0
  %595 = vmatprep.subr.bf16.mxu0 0
  %596 = vmatpush1.bf16.msra.mxu0 0
  %597 = vmatprep.subr.bf16.mxu0 0
  %598 = vmatpush1.bf16.msra.mxu0 0
  %599 = vmatprep.subr.bf16.mxu0 0
  %600 = vmatpush1.bf16.msra.mxu0 0
  %601 = vmatprep.subr.bf16.mxu0 0
  %602 = vmatpush1.bf16.msra.mxu0 0
  %603 = vmatprep.subr.bf16.mxu0 0
  %604 = vmatpush1.bf16.msra.mxu0 0
  %605 = vmatprep.subr.bf16.mxu0 0
  %606 = vmatpush1.bf16.msra.mxu0 0
  %607 = vmatprep.subr.bf16.mxu0 0
  %608 = vmatpush1.bf16.msra.mxu0 0
  %609 = vmatprep.subr.bf16.mxu0 0
  %610 = vmatpush1.bf16.msra.mxu0 0
  %611 = vmatprep.subr.bf16.mxu0 0
  %612 = vmatpush1.bf16.msra.mxu0 0
  %613 = vmatprep.subr.bf16.mxu0 0
  %614 = vmatpush1.bf16.msra.mxu0 0
  %615 = vmatprep.mubr.bf16.mxu0 0
  %616 = vmatmul.mubr.bf16.gmra.mrb[0].mxu0 %v581
  %v617 = vpop.f32.mrb[0].mxu0
  %v618 = vadd.f32 0.0, %v617
  %v619 = vpop.f32.mrb[0].mxu0
  %v620 = vpop.f32.mrb[0].mxu0
  %v621 = vpop.f32.mrb[0].mxu0
  %622 = vdwg.mxu0
  %v623 = vadd.f32 %v575, %v618
  %v624 = vxor.u32 %v623, 2147483648
  %v625 = vmul.f32 %v624, 1.442695
  %v626 = vpow.pop %v625
  %v627 = vadd.f32 %v626, 1.0
  %v628 = vrcp.pop %v627
  %v629 = vmul.f32 1.0, %v628
  %v630 = vadd.f32 %v618, %v248
  %632 = vrot.lane.b32.xlu0 %v630, 64
  %v633 = vpop.permute.xlu0 %632
  %v635 = vmul.f32 %v629, %v633
  %637 = vrot.lane.b32.xlu0 %v635, 64
  %v638 = vpop.permute.xlu0 %637
  %v640 = vadd.f32 %v575, %v638
  %v641 = vtanh.pop %v640
  %v642 = vsub.f32 1.0, %v629
  %644 = vrot.lane.b32.xlu0 %v641, 96
  %v645 = vpop.permute.xlu0 %644
  %v647 = vmul.f32 %v642, %v645
  %v648 = vmul.f32 %v629, %v573
  %v649 = vadd.f32 %v647, %v648
  %s650 = scalar_lea.vmem [#allocation2], 48
  %v651 = vld [vmem:[%s650] sm:$0xff]
  %v652 = vpack.c.bf16 %v649, %v649
  %654 = vrot.lane.b32.xlu0 %v652, 96
  %v655 = vpop.permute.xlu0 %654
  %v657 = vsel %vm196, %v655, 0
  %659 = vmatprep.subr.bf16.mxu0 0
  %660 = vmatpush1.bf16.msra.mxu0 %v192
  %661 = vmatprep.subr.bf16.mxu0 0
  %662 = vmatpush1.bf16.msra.mxu0 %v193
  %663 = vmatprep.subr.bf16.mxu0 0
  %664 = vmatpush1.bf16.msra.mxu0 0
  %665 = vmatprep.subr.bf16.mxu0 0
  %666 = vmatpush1.bf16.msra.mxu0 0
  %667 = vmatprep.subr.bf16.mxu0 0
  %668 = vmatpush1.bf16.msra.mxu0 0
  %669 = vmatprep.subr.bf16.mxu0 0
  %670 = vmatpush1.bf16.msra.mxu0 0
  %671 = vmatprep.subr.bf16.mxu0 0
  %672 = vmatpush1.bf16.msra.mxu0 0
  %673 = vmatprep.subr.bf16.mxu0 0
  %674 = vmatpush1.bf16.msra.mxu0 0
  %675 = vmatprep.subr.bf16.mxu0 0
  %676 = vmatpush1.bf16.msra.mxu0 0
  %677 = vmatprep.subr.bf16.mxu0 0
  %678 = vmatpush1.bf16.msra.mxu0 0
  %679 = vmatprep.subr.bf16.mxu0 0
  %680 = vmatpush1.bf16.msra.mxu0 0
  %681 = vmatprep.subr.bf16.mxu0 0
  %682 = vmatpush1.bf16.msra.mxu0 0
  %683 = vmatprep.subr.bf16.mxu0 0
  %684 = vmatpush1.bf16.msra.mxu0 0
  %685 = vmatprep.subr.bf16.mxu0 0
  %686 = vmatpush1.bf16.msra.mxu0 0
  %687 = vmatprep.subr.bf16.mxu0 0
  %688 = vmatpush1.bf16.msra.mxu0 0
  %689 = vmatprep.subr.bf16.mxu0 0
  %690 = vmatpush1.bf16.msra.mxu0 0
  %691 = vmatprep.mubr.bf16.mxu0 0
  %692 = vmatmul.mubr.bf16.gmra.mrb[0].mxu0 %v657
  %v693 = vpop.f32.mrb[0].mxu0
  %v694 = vadd.f32 0.0, %v693
  %v695 = vpop.f32.mrb[0].mxu0
  %v696 = vpop.f32.mrb[0].mxu0
  %v697 = vpop.f32.mrb[0].mxu0
  %698 = vdwg.mxu0
  %v699 = vadd.f32 %v651, %v694
  %v700 = vxor.u32 %v699, 2147483648
  %v701 = vmul.f32 %v700, 1.442695
  %v702 = vpow.pop %v701
  %v703 = vadd.f32 %v702, 1.0
  %v704 = vrcp.pop %v703
  %v705 = vmul.f32 1.0, %v704
  %v706 = vadd.f32 %v694, %v248
  %708 = vrot.lane.b32.xlu0 %v706, 64
  %v709 = vpop.permute.xlu0 %708
  %v711 = vmul.f32 %v705, %v709
  %713 = vrot.lane.b32.xlu0 %v711, 64
  %v714 = vpop.permute.xlu0 %713
  %v716 = vadd.f32 %v651, %v714
  %v717 = vtanh.pop %v716
  %v718 = vsub.f32 1.0, %v705
  %720 = vrot.lane.b32.xlu0 %v717, 96
  %v721 = vpop.permute.xlu0 %720
  %v723 = vmul.f32 %v718, %v721
  %v724 = vmul.f32 %v705, %v649
  %v725 = vadd.f32 %v723, %v724
  %s726 = scalar_lea.vmem [#allocation2], 56
  %v727 = vld [vmem:[%s726] sm:$0xff]
  %v728 = vpack.c.bf16 %v725, %v725
  %730 = vrot.lane.b32.xlu0 %v728, 96
  %v731 = vpop.permute.xlu0 %730
  %v733 = vsel %vm196, %v731, 0
  %735 = vmatprep.subr.bf16.mxu0 0
  %736 = vmatpush1.bf16.msra.mxu0 %v192
  %737 = vmatprep.subr.bf16.mxu0 0
  %738 = vmatpush1.bf16.msra.mxu0 %v193
  %739 = vmatprep.subr.bf16.mxu0 0
  %740 = vmatpush1.bf16.msra.mxu0 0
  %741 = vmatprep.subr.bf16.mxu0 0
  %742 = vmatpush1.bf16.msra.mxu0 0
  %743 = vmatprep.subr.bf16.mxu0 0
  %744 = vmatpush1.bf16.msra.mxu0 0
  %745 = vmatprep.subr.bf16.mxu0 0
  %746 = vmatpush1.bf16.msra.mxu0 0
  %747 = vmatprep.subr.bf16.mxu0 0
  %748 = vmatpush1.bf16.msra.mxu0 0
  %749 = vmatprep.subr.bf16.mxu0 0
  %750 = vmatpush1.bf16.msra.mxu0 0
  %751 = vmatprep.subr.bf16.mxu0 0
  %752 = vmatpush1.bf16.msra.mxu0 0
  %753 = vmatprep.subr.bf16.mxu0 0
  %754 = vmatpush1.bf16.msra.mxu0 0
  %755 = vmatprep.subr.bf16.mxu0 0
  %756 = vmatpush1.bf16.msra.mxu0 0
  %757 = vmatprep.subr.bf16.mxu0 0
  %758 = vmatpush1.bf16.msra.mxu0 0
  %759 = vmatprep.subr.bf16.mxu0 0
  %760 = vmatpush1.bf16.msra.mxu0 0
  %761 = vmatprep.subr.bf16.mxu0 0
  %762 = vmatpush1.bf16.msra.mxu0 0
  %763 = vmatprep.subr.bf16.mxu0 0
  %764 = vmatpush1.bf16.msra.mxu0 0
  %765 = vmatprep.subr.bf16.mxu0 0
  %766 = vmatpush1.bf16.msra.mxu0 0
  %767 = vmatprep.mubr.bf16.mxu0 0
  %768 = vmatmul.mubr.bf16.gmra.mrb[0].mxu0 %v733
  %v769 = vpop.f32.mrb[0].mxu0
  %v770 = vadd.f32 0.0, %v769
  %v771 = vpop.f32.mrb[0].mxu0
  %v772 = vpop.f32.mrb[0].mxu0
  %v773 = vpop.f32.mrb[0].mxu0
  %774 = vdwg.mxu0
  %v775 = vadd.f32 %v727, %v770
  %v776 = vxor.u32 %v775, 2147483648
  %v777 = vmul.f32 %v776, 1.442695
  %v778 = vpow.pop %v777
  %v779 = vadd.f32 %v778, 1.0
  %v780 = vrcp.pop %v779
  %v781 = vmul.f32 1.0, %v780
  %v782 = vadd.f32 %v770, %v248
  %784 = vrot.lane.b32.xlu0 %v782, 64
  %v785 = vpop.permute.xlu0 %784
  %v787 = vmul.f32 %v781, %v785
  %789 = vrot.lane.b32.xlu0 %v787, 64
  %v790 = vpop.permute.xlu0 %789
  %v792 = vadd.f32 %v727, %v790
  %v793 = vtanh.pop %v792
  %v794 = vsub.f32 1.0, %v781
  %796 = vrot.lane.b32.xlu0 %v793, 96
  %v797 = vpop.permute.xlu0 %796
  %v799 = vmul.f32 %v794, %v797
  %v800 = vmul.f32 %v781, %v725
  %v801 = vadd.f32 %v799, %v800
  %v802 = vpack.c.bf16 %v801, %v801
  %v803 = vld [vmem:[%s5] sm:$0xf]
  %v804 = vld [vmem:[%s5 + $0x4] sm:$0xf]
  %v805 = vld [vmem:[%s5 + $0x8] sm:$0xf]
  %v806 = vld [vmem:[%s5 + $0xc] sm:$0xf]
  %v807 = vld [vmem:[%s6] sm:$0x1]
  %v809 = vlaneseq
  %v810 = vshrl.u32 %v809, 7
  %v811 = vsub.s32 0, %v810
  %v812 = vrot.slane %v807, %v811
  %815 = vrot.lane.b32.xlu0 %v802, 96
  %v816 = vpop.permute.xlu0 %815
  %v821 = vunpack.c.l.b16 %v803
  %v822 = vunpack.c.l.b16 %v804
  %v823 = vunpack.c.l.b16 %v805
  %v824 = vunpack.c.l.b16 %v806
  %v825 = vpack.c.b16 %v822, %v821
  %v826 = vpack.c.b16 %v824, %v823
  %v830 = vsel %vm196, %v816, 0
  %832 = vmatprep.subr.bf16.mxu0 0
  %833 = vmatpush1.bf16.msra.mxu0 %v825
  %834 = vmatprep.subr.bf16.mxu0 0
  %835 = vmatpush1.bf16.msra.mxu0 %v826
  %836 = vmatprep.subr.bf16.mxu0 0
  %837 = vmatpush1.bf16.msra.mxu0 0
  %838 = vmatprep.subr.bf16.mxu0 0
  %839 = vmatpush1.bf16.msra.mxu0 0
  %840 = vmatprep.subr.bf16.mxu0 0
  %841 = vmatpush1.bf16.msra.mxu0 0
  %842 = vmatprep.subr.bf16.mxu0 0
  %843 = vmatpush1.bf16.msra.mxu0 0
  %844 = vmatprep.subr.bf16.mxu0 0
  %845 = vmatpush1.bf16.msra.mxu0 0
  %846 = vmatprep.subr.bf16.mxu0 0
  %847 = vmatpush1.bf16.msra.mxu0 0
  %848 = vmatprep.subr.bf16.mxu0 0
  %849 = vmatpush1.bf16.msra.mxu0 0
  %850 = vmatprep.subr.bf16.mxu0 0
  %851 = vmatpush1.bf16.msra.mxu0 0
  %852 = vmatprep.subr.bf16.mxu0 0
  %853 = vmatpush1.bf16.msra.mxu0 0
  %854 = vmatprep.subr.bf16.mxu0 0
  %855 = vmatpush1.bf16.msra.mxu0 0
  %856 = vmatprep.subr.bf16.mxu0 0
  %857 = vmatpush1.bf16.msra.mxu0 0
  %858 = vmatprep.subr.bf16.mxu0 0
  %859 = vmatpush1.bf16.msra.mxu0 0
  %860 = vmatprep.subr.bf16.mxu0 0
  %861 = vmatpush1.bf16.msra.mxu0 0
  %862 = vmatprep.subr.bf16.mxu0 0
  %863 = vmatpush1.bf16.msra.mxu0 0
  %864 = vmatprep.mubr.bf16.mxu0 0
  %865 = vmatmul.mubr.bf16.gmra.mrb[0].mxu0 %v830
  %v866 = vpop.f32.mrb[0].mxu0
  %v867 = vadd.f32 %v812, %v866
  %v868 = vpop.f32.mrb[0].mxu0
  %v869 = vpop.f32.mrb[0].mxu0
  %v870 = vpop.f32.mrb[0].mxu0
  %871 = vdwg.mxu0
  %v872 = vmul.f32 %v867, %v867
  %873 = vadd.xlane.f32.xlu0 %v872
  %v874 = vpop.xlane.xlu0 %873
  %v875 = vmax.f32 %v874, 1e-24
  %v876 = vrsqrt.pop %v875
  %v877 = vmul.f32 %v867, %v876
  %878 = vst [vmem:[%s7] sm:$0xff] %v877
  // Predicated region
  $region30: #{topkid_trinet.1} parent=0 // pred_check
    _
  $region31: #{topkid_trinet.1} parent=0 // pred_check_branch
    %880 = sbr.rel (0) target = $region33
  $region32: #{topkid_trinet.1} parent=0 // pred_region
    _
  $region33: #{topkid_trinet.1} parent=0 // pred_fallthru
    _
  // Predicated region
  $region34: #{topkid_trinet.1} parent=0 // pred_check
    _
  $region35: #{topkid_trinet.1} parent=0 // pred_check_branch
    %882 = sbr.rel (0) target = $region37
  $region36: #{topkid_trinet.1} parent=0 // pred_region
    _
  $region37: #{topkid_trinet.1} parent=0 // pred_fallthru
    _

</llo_original>
